<compile_context>
chip_gen: v7x
topology: tpu7x:2x2x1
jax: 0.10.0
libtpu: 0.0.40
codegen_flags: <defaults>
</compile_context>

<pallas_src>
import jax
import jax.numpy as jnp
from jax import lax
from jax.experimental import pallas as pl
from jax.experimental.pallas import tpu as pltpu

# ----------------------- problem sizes (synthetic, small) -------------------
B = 2              # image batch
C, H, W = 4, 16, 16
P = C * H * W      # flattened pixel dim = 1024
NUM_CLASSES = 4
N_CTX = 4          # number of learnable context tokens
CTX_DIM = 32       # context / token-embedding dim
SEQ_LEN = 16       # tokenized prompt length (1 prefix + N_CTX + suffix)
SUF_LEN = SEQ_LEN - 1 - N_CTX
EMBED = 32         # joint embedding dim

# padding for a lane/sublane-dense output slab
B_PAD = 8          # sublane-pad batch
NC_PAD = 128       # lane-pad classes

EPS = 1e-12        # only guards padded all-zero rows; real rows are unaffected


# ---------------- fused kernel: prompts + encoders + norm + logits ----------
def clip_head_kernel(img_ref, wimg_ref, ctx_ref, presuf_ref, wtxt_ref,
                     scale_ref, out_ref):
    # image encoder (surrogate): [B_PAD, P]bf16 @ [P, E]bf16 -> f32 acc on MXU
    f_img = jnp.dot(img_ref[...], wimg_ref[...],
                    preferred_element_type=jnp.float32)            # [B_PAD, E]

    # text path: prompts = cat([prefix, context, suffix], dim=1) followed by
    # the surrogate mean-pool collapses to per-class (prefix+suffix sum) plus
    # the shared context sum -- no [NC, SEQ, D] tensor is ever materialized.
    ctx_sum = jnp.sum(ctx_ref[...], axis=0, keepdims=True)         # [1, D]
    pooled = (presuf_ref[...] + ctx_sum) * (1.0 / SEQ_LEN)         # [NC_PAD, D]
    f_txt = jnp.dot(pooled.astype(jnp.bfloat16), wtxt_ref[...],
                    preferred_element_type=jnp.float32)            # [NC_PAD, E]

    # L2 normalize: features / features.norm(dim=-1, keepdim=True)
    # (rsqrt -> EUP slot; eps only matters for the padded zero rows)
    f_img = f_img * lax.rsqrt(
        jnp.maximum(jnp.sum(f_img * f_img, axis=-1, keepdims=True), EPS))
    f_txt = f_txt * lax.rsqrt(
        jnp.maximum(jnp.sum(f_txt * f_txt, axis=-1, keepdims=True), EPS))

    # logits = logit_scale.exp() * img @ text.T
    # (contract last dims of both operands -> no staged transpose of f_txt)
    scale = jnp.exp(scale_ref[0, 0])
    logits = lax.dot_general(f_img, f_txt,
                             dimension_numbers=(((1,), (1,)), ((), ())),
                             preferred_element_type=jnp.float32)   # [B_PAD, NC_PAD]
    out_ref[...] = scale * logits


def clip_head(img_pad, w_img, context, presuf_pad, w_txt, logit_scale):
    return pl.pallas_call(
        clip_head_kernel,
        out_shape=jax.ShapeDtypeStruct((B_PAD, NC_PAD), jnp.float32),
        in_specs=[
            pl.BlockSpec(memory_space=pltpu.MemorySpace.VMEM),   # img    [8, P]   bf16
            pl.BlockSpec(memory_space=pltpu.MemorySpace.VMEM),   # w_img  [P, E]   bf16
            pl.BlockSpec(memory_space=pltpu.MemorySpace.VMEM),   # context [N_CTX, D] f32
            pl.BlockSpec(memory_space=pltpu.MemorySpace.VMEM),   # presuf [128, D] f32
            pl.BlockSpec(memory_space=pltpu.MemorySpace.VMEM),   # w_txt  [D, E]   bf16
            pl.BlockSpec(memory_space=pltpu.MemorySpace.SMEM),   # logit_scale (1,1) f32
        ],
        out_specs=pl.BlockSpec(memory_space=pltpu.MemorySpace.VMEM),
    )(img_pad, w_img, context, presuf_pad, w_txt, logit_scale)


# ----------------------------- module wrapper --------------------------------
def init_params(key):
    k1, k2, k3, k4, k5 = jax.random.split(key, 5)
    # PromptLearner: generic (non-CSC) context, std=0.02 (nn.init.normal_)
    context = 0.02 * jax.random.normal(k1, (N_CTX, CTX_DIM), jnp.float32)
    # frozen token-embedding buffers (synthetic stand-ins)
    token_prefix = jax.random.normal(k2, (NUM_CLASSES, 1, CTX_DIM), jnp.float32)
    token_suffix = jax.random.normal(k3, (NUM_CLASSES, SUF_LEN, CTX_DIM), jnp.float32)
    # fold frozen prefix + suffix into a per-class sum once, zero-padded to a
    # lane-dense 128-class slab (off the hot path; buffers are not trainable)
    presuf = token_prefix[:, 0, :] + jnp.sum(token_suffix, axis=1)   # [NC, D]
    presuf_pad = jnp.zeros((NC_PAD, CTX_DIM), jnp.float32).at[:NUM_CLASSES].set(presuf)
    return {
        "context": context,
        "token_prefix": token_prefix,
        "token_suffix": token_suffix,
        "presuf_pad": presuf_pad,
        # surrogate encoders
        "w_img": (1.0 / P) * jax.random.normal(k4, (P, EMBED), jnp.float32),
        "w_txt": (1.0 / CTX_DIM) * jax.random.normal(k5, (CTX_DIM, EMBED), jnp.float32),
        # CLIP default: logit_scale = ln(1/0.07)
        "logit_scale": jnp.full((1, 1), jnp.log(1.0 / 0.07), jnp.float32),
    }


@jax.jit
def optimized_context_forward(img_nchw, params):
    # glue: flatten NCHW -> [B, P], bf16 MXU operands, pad batch to 8 sublanes
    img_flat = img_nchw.reshape(B, P).astype(jnp.bfloat16)
    img_pad = jnp.zeros((B_PAD, P), jnp.bfloat16).at[:B].set(img_flat)
    logits_pad = clip_head(
        img_pad,
        params["w_img"].astype(jnp.bfloat16),
        params["context"],
        params["presuf_pad"],
        params["w_txt"].astype(jnp.bfloat16),
        params["logit_scale"],
    )
    return logits_pad[:B, :NUM_CLASSES]   # [B, NUM_CLASSES]


if __name__ == "__main__":
    key = jax.random.PRNGKey(0)
    k_img, k_par = jax.random.split(key)
    img = jax.random.normal(k_img, (B, C, H, W), jnp.float32)   # NCHW
    params = init_params(k_par)

    logits = optimized_context_forward(img, params)
    jax.block_until_ready(logits)
    assert logits.shape == (B, NUM_CLASSES)
    assert jnp.all(jnp.isfinite(logits))
    print("KERNEL_OK")
</pallas_src>

<mosaic_0001>
module attributes {stable_mosaic.version = 11 : i64} {
  func.func @clip_head_kernel(%arg0: memref<8x1024xbf16, #tpu.memory_space<vmem>>, %arg1: memref<1024x32xbf16, #tpu.memory_space<vmem>>, %arg2: memref<4x32xf32, #tpu.memory_space<vmem>>, %arg3: memref<128x32xf32, #tpu.memory_space<vmem>>, %arg4: memref<32x32xbf16, #tpu.memory_space<vmem>>, %arg5: memref<1x1xf32, #tpu.memory_space<smem>>, %arg6: memref<8x128xf32, #tpu.memory_space<vmem>>) attributes {dimension_semantics = [], scalar_prefetch = 0 : i64, scratch_operands = 0 : i64, tpu.core_type = #tpu.core_type<tc>} {
    %c0 = arith.constant 0 : index
    %c0_0 = arith.constant 0 : index
    %0 = vector.load %arg0[%c0, %c0_0] : memref<8x1024xbf16, #tpu.memory_space<vmem>>, vector<8x1024xbf16>
    %c0_1 = arith.constant 0 : index
    %c0_2 = arith.constant 0 : index
    %1 = vector.load %arg1[%c0_1, %c0_2] : memref<1024x32xbf16, #tpu.memory_space<vmem>>, vector<1024x32xbf16>
    %cst = arith.constant dense<0.000000e+00> : vector<8x32xf32>
    %2 = tpu.matmul %0, %1, %cst {dimension_numbers = #tpu.dot_dimension_numbers<[1], [0], [0], [1], [0, 0, 1, 1], [], []>} : vector<8x1024xbf16>, vector<1024x32xbf16>, vector<8x32xf32> -> vector<8x32xf32>
    %c0_3 = arith.constant 0 : index
    %c0_4 = arith.constant 0 : index
    %3 = vector.load %arg2[%c0_3, %c0_4] : memref<4x32xf32, #tpu.memory_space<vmem>>, vector<4x32xf32>
    %cst_5 = arith.constant dense<0.000000e+00> : vector<32xf32>
    %4 = vector.multi_reduction <add>, %3, %cst_5 [0] : vector<4x32xf32> to vector<32xf32>
    %5 = vector.shape_cast %4 : vector<32xf32> to vector<1x32xf32>
    %c0_6 = arith.constant 0 : index
    %c0_7 = arith.constant 0 : index
    %6 = vector.load %arg3[%c0_6, %c0_7] : memref<128x32xf32, #tpu.memory_space<vmem>>, vector<128x32xf32>
    %7 = vector.broadcast %5 : vector<1x32xf32> to vector<128x32xf32>
    %8 = arith.addf %6, %7 : vector<128x32xf32>
    %cst_8 = arith.constant 6.250000e-02 : f32
    %9 = vector.broadcast %cst_8 : f32 to vector<128x32xf32>
    %10 = arith.mulf %8, %9 : vector<128x32xf32>
    %11 = arith.truncf %10 : vector<128x32xf32> to vector<128x32xbf16>
    %c0_9 = arith.constant 0 : index
    %c0_10 = arith.constant 0 : index
    %12 = vector.load %arg4[%c0_9, %c0_10] : memref<32x32xbf16, #tpu.memory_space<vmem>>, vector<32x32xbf16>
    %cst_11 = arith.constant dense<0.000000e+00> : vector<128x32xf32>
    %13 = tpu.matmul %11, %12, %cst_11 {dimension_numbers = #tpu.dot_dimension_numbers<[1], [0], [0], [1], [0, 0, 1, 1], [], []>} : vector<128x32xbf16>, vector<32x32xbf16>, vector<128x32xf32> -> vector<128x32xf32>
    %14 = arith.mulf %2, %2 : vector<8x32xf32>
    %cst_12 = arith.constant dense<0.000000e+00> : vector<8xf32>
    %15 = vector.multi_reduction <add>, %14, %cst_12 [1] : vector<8x32xf32> to vector<8xf32>
    %16 = vector.shape_cast %15 : vector<8xf32> to vector<8x1xf32>
    %cst_13 = arith.constant 9.99999996E-13 : f32
    %17 = vector.broadcast %cst_13 : f32 to vector<8x1xf32>
    %18 = arith.maximumf %16, %17 : vector<8x1xf32>
    %19 = math.rsqrt %18 : vector<8x1xf32>
    %20 = vector.broadcast %19 : vector<8x1xf32> to vector<8x32xf32>
    %21 = arith.mulf %2, %20 : vector<8x32xf32>
    %22 = arith.mulf %13, %13 : vector<128x32xf32>
    %cst_14 = arith.constant dense<0.000000e+00> : vector<128xf32>
    %23 = vector.multi_reduction <add>, %22, %cst_14 [1] : vector<128x32xf32> to vector<128xf32>
    %24 = vector.shape_cast %23 : vector<128xf32> to vector<128x1xf32>
    %cst_15 = arith.constant 9.99999996E-13 : f32
    %25 = vector.broadcast %cst_15 : f32 to vector<128x1xf32>
    %26 = arith.maximumf %24, %25 : vector<128x1xf32>
    %27 = math.rsqrt %26 : vector<128x1xf32>
    %28 = vector.broadcast %27 : vector<128x1xf32> to vector<128x32xf32>
    %29 = arith.mulf %13, %28 : vector<128x32xf32>
    %c0_16 = arith.constant 0 : index
    %c0_17 = arith.constant 0 : index
    %30 = memref.load %arg5[%c0_16, %c0_17] : memref<1x1xf32, #tpu.memory_space<smem>>
    %31 = math.exp %30 : f32
    %cst_18 = arith.constant dense<0.000000e+00> : vector<8x128xf32>
    %32 = tpu.matmul %21, %29, %cst_18 {dimension_numbers = #tpu.dot_dimension_numbers<[1], [1], [0], [0], [0, 0, 1, 0], [], []>} : vector<8x32xf32>, vector<128x32xf32>, vector<8x128xf32> -> vector<8x128xf32>
    %33 = vector.broadcast %31 : f32 to vector<8x128xf32>
    %34 = arith.mulf %33, %32 : vector<8x128xf32>
    %c0_19 = arith.constant 0 : index
    %c0_20 = arith.constant 0 : index
    %35 = vector.load %arg6[%c0_19, %c0_20] : memref<8x128xf32, #tpu.memory_space<vmem>>, vector<8x128xf32>
    tpu.vector_store %arg6[%c0_19, %c0_20], %34 {strides = array<i32>} : memref<8x128xf32, #tpu.memory_space<vmem>>, vector<8x128xf32>,
    return
  }
}

</mosaic_0001>

<llo_original>
// kernel: optimized_context_forward.1
$region0: #{optimized_context_forward.1}
  #allocation0 [shape = 'u32[]', space=smem, size = 0x4, offset = 0x4, fixed_abs, tag = 'smem constant byte address 0x4 - core index']
  #allocation1 [shape = 'u32[144,128]{1,0:T(1,128)}', space=vmem, size = 0x12000, scoped, tag = 'internal scratch']
  #allocation2 [shape = 'f32[1,1]{1,0:T(1,128)S(6)}', space=smem, size = 0x200, scoped, tag = 'scoped memory for optimized_context_forward.1']
  %s0 = inlined_call_operand.vmem [shape: bf16[8,1024], index: 0, kind: input, shape index: {}]
  %s1 = inlined_call_operand.vmem [shape: bf16[1024,32], index: 1, kind: input, shape index: {}]
  %s2 = inlined_call_operand.vmem [shape: f32[4,32], index: 2, kind: input, shape index: {}]
  %s3 = inlined_call_operand.vmem [shape: f32[128,32], index: 3, kind: input, shape index: {}]
  %s4 = inlined_call_operand.vmem [shape: bf16[32,32], index: 4, kind: input, shape index: {}]
  %s5 = inlined_call_operand.<no memory space> [shape: f32[1,1], index: 5, kind: input, shape index: {}]
  %s6 = inlined_call_operand.vmem [shape: f32[8,128], index: 6, kind: output, shape index: {}]
  %s7 = sld [smem:[#allocation0]]
  $region34: #{optimized_context_forward.1} parent=0
    _
  %s9 = ssub.s32 1, %s7
  %s10 = scalar_select 0, %s9, %s7
  %11 = sst [smem:[#allocation2]] %s5
  // Predicated region
  $region2: #{optimized_context_forward.1} parent=0 // pred_check
    _
  $region3: #{optimized_context_forward.1} parent=0 // pred_check_branch
    %13 = sbr.rel (0) target = $region5
  $region4: #{optimized_context_forward.1} parent=0 // pred_region
    _
  $region5: #{optimized_context_forward.1} parent=0 // pred_fallthru
    _
  // Predicated region
  $region6: #{optimized_context_forward.1} parent=0 // pred_check
    _
  $region7: #{optimized_context_forward.1} parent=0 // pred_check_branch
    %15 = sbr.rel (0) target = $region9
  $region8: #{optimized_context_forward.1} parent=0 // pred_region
    _
  $region9: #{optimized_context_forward.1} parent=0 // pred_fallthru
    _
  // Predicated region
  $region10: #{optimized_context_forward.1} parent=0 // pred_check
    _
  $region11: #{optimized_context_forward.1} parent=0 // pred_check_branch
    %17 = sbr.rel (0) target = $region13
  $region12: #{optimized_context_forward.1} parent=0 // pred_region
    _
  $region13: #{optimized_context_forward.1} parent=0 // pred_fallthru
    _
  // Predicated region
  $region14: #{optimized_context_forward.1} parent=0 // pred_check
    _
  $region15: #{optimized_context_forward.1} parent=0 // pred_check_branch
    %19 = sbr.rel (0) target = $region17
  $region16: #{optimized_context_forward.1} parent=0 // pred_region
    _
  $region17: #{optimized_context_forward.1} parent=0 // pred_fallthru
    _
  // Predicated region
  $region18: #{optimized_context_forward.1} parent=0 // pred_check
    _
  $region19: #{optimized_context_forward.1} parent=0 // pred_check_branch
    %21 = sbr.rel (0) target = $region21
  $region20: #{optimized_context_forward.1} parent=0 // pred_region
    _
  $region21: #{optimized_context_forward.1} parent=0 // pred_fallthru
    _
  // Predicated region
  $region22: #{optimized_context_forward.1} parent=0 // pred_check
    _
  $region23: #{optimized_context_forward.1} parent=0 // pred_check_branch
    %23 = sbr.rel (0) target = $region25
  $region24: #{optimized_context_forward.1} parent=0 // pred_region
    _
  $region25: #{optimized_context_forward.1} parent=0 // pred_fallthru
    _
  %v25 = vld [vmem:[%s0] sm:$0xff]
  %v26 = vld [vmem:[%s0 + $0x8] sm:$0xff]
  %v27 = vld [vmem:[%s0 + $0x10] sm:$0xff]
  %v28 = vld [vmem:[%s0 + $0x18] sm:$0xff]
  %v29 = vld [vmem:[%s1] sm:$0xf]
  %v30 = vld [vmem:[%s1 + $0x4] sm:$0xf]
  %v31 = vld [vmem:[%s1 + $0x8] sm:$0xf]
  %v32 = vld [vmem:[%s1 + $0xc] sm:$0xf]
  %v33 = vld [vmem:[%s1 + $0x10] sm:$0xf]
  %v34 = vld [vmem:[%s1 + $0x14] sm:$0xf]
  %v35 = vld [vmem:[%s1 + $0x18] sm:$0xf]
  %v36 = vld [vmem:[%s1 + $0x1c] sm:$0xf]
  %v37 = vld [vmem:[%s1 + $0x20] sm:$0xf]
  %v38 = vld [vmem:[%s1 + $0x24] sm:$0xf]
  %v39 = vld [vmem:[%s1 + $0x28] sm:$0xf]
  %v40 = vld [vmem:[%s1 + $0x2c] sm:$0xf]
  %v41 = vld [vmem:[%s1 + $0x30] sm:$0xf]
  %v42 = vld [vmem:[%s1 + $0x34] sm:$0xf]
  %v43 = vld [vmem:[%s1 + $0x38] sm:$0xf]
  %v44 = vld [vmem:[%s1 + $0x3c] sm:$0xf]
  %v45 = vld [vmem:[%s1 + $0x40] sm:$0xf]
  %v46 = vld [vmem:[%s1 + $0x44] sm:$0xf]
  %v47 = vld [vmem:[%s1 + $0x48] sm:$0xf]
  %v48 = vld [vmem:[%s1 + $0x4c] sm:$0xf]
  %v49 = vld [vmem:[%s1 + $0x50] sm:$0xf]
  %v50 = vld [vmem:[%s1 + $0x54] sm:$0xf]
  %v51 = vld [vmem:[%s1 + $0x58] sm:$0xf]
  %v52 = vld [vmem:[%s1 + $0x5c] sm:$0xf]
  %v53 = vld [vmem:[%s1 + $0x60] sm:$0xf]
  %v54 = vld [vmem:[%s1 + $0x64] sm:$0xf]
  %v55 = vld [vmem:[%s1 + $0x68] sm:$0xf]
  %v56 = vld [vmem:[%s1 + $0x6c] sm:$0xf]
  %v57 = vld [vmem:[%s1 + $0x70] sm:$0xf]
  %v58 = vld [vmem:[%s1 + $0x74] sm:$0xf]
  %v59 = vld [vmem:[%s1 + $0x78] sm:$0xf]
  %v60 = vld [vmem:[%s1 + $0x7c] sm:$0xf]
  %v61 = vld [vmem:[%s1 + $0x80] sm:$0xf]
  %v62 = vld [vmem:[%s1 + $0x84] sm:$0xf]
  %v63 = vld [vmem:[%s1 + $0x88] sm:$0xf]
  %v64 = vld [vmem:[%s1 + $0x8c] sm:$0xf]
  %v65 = vld [vmem:[%s1 + $0x90] sm:$0xf]
  %v66 = vld [vmem:[%s1 + $0x94] sm:$0xf]
  %v67 = vld [vmem:[%s1 + $0x98] sm:$0xf]
  %v68 = vld [vmem:[%s1 + $0x9c] sm:$0xf]
  %v69 = vld [vmem:[%s1 + $0xa0] sm:$0xf]
  %v70 = vld [vmem:[%s1 + $0xa4] sm:$0xf]
  %v71 = vld [vmem:[%s1 + $0xa8] sm:$0xf]
  %v72 = vld [vmem:[%s1 + $0xac] sm:$0xf]
  %v73 = vld [vmem:[%s1 + $0xb0] sm:$0xf]
  %v74 = vld [vmem:[%s1 + $0xb4] sm:$0xf]
  %v75 = vld [vmem:[%s1 + $0xb8] sm:$0xf]
  %v76 = vld [vmem:[%s1 + $0xbc] sm:$0xf]
  %v77 = vld [vmem:[%s1 + $0xc0] sm:$0xf]
  %v78 = vld [vmem:[%s1 + $0xc4] sm:$0xf]
  %v79 = vld [vmem:[%s1 + $0xc8] sm:$0xf]
  %v80 = vld [vmem:[%s1 + $0xcc] sm:$0xf]
  %v81 = vld [vmem:[%s1 + $0xd0] sm:$0xf]
  %v82 = vld [vmem:[%s1 + $0xd4] sm:$0xf]
  %v83 = vld [vmem:[%s1 + $0xd8] sm:$0xf]
  %v84 = vld [vmem:[%s1 + $0xdc] sm:$0xf]
  %v85 = vld [vmem:[%s1 + $0xe0] sm:$0xf]
  %v86 = vld [vmem:[%s1 + $0xe4] sm:$0xf]
  %v87 = vld [vmem:[%s1 + $0xe8] sm:$0xf]
  %v88 = vld [vmem:[%s1 + $0xec] sm:$0xf]
  %v89 = vld [vmem:[%s1 + $0xf0] sm:$0xf]
  %v90 = vld [vmem:[%s1 + $0xf4] sm:$0xf]
  %v91 = vld [vmem:[%s1 + $0xf8] sm:$0xf]
  %v92 = vld [vmem:[%s1 + $0xfc] sm:$0xf]
  %v93 = vld [vmem:[%s1 + $0x100] sm:$0xf]
  %v94 = vld [vmem:[%s1 + $0x104] sm:$0xf]
  %v95 = vld [vmem:[%s1 + $0x108] sm:$0xf]
  %v96 = vld [vmem:[%s1 + $0x10c] sm:$0xf]
  %v97 = vld [vmem:[%s1 + $0x110] sm:$0xf]
  %v98 = vld [vmem:[%s1 + $0x114] sm:$0xf]
  %v99 = vld [vmem:[%s1 + $0x118] sm:$0xf]
  %v100 = vld [vmem:[%s1 + $0x11c] sm:$0xf]
  %v101 = vld [vmem:[%s1 + $0x120] sm:$0xf]
  %v102 = vld [vmem:[%s1 + $0x124] sm:$0xf]
  %v103 = vld [vmem:[%s1 + $0x128] sm:$0xf]
  %v104 = vld [vmem:[%s1 + $0x12c] sm:$0xf]
  %v105 = vld [vmem:[%s1 + $0x130] sm:$0xf]
  %v106 = vld [vmem:[%s1 + $0x134] sm:$0xf]
  %v107 = vld [vmem:[%s1 + $0x138] sm:$0xf]
  %v108 = vld [vmem:[%s1 + $0x13c] sm:$0xf]
  %v109 = vld [vmem:[%s1 + $0x140] sm:$0xf]
  %v110 = vld [vmem:[%s1 + $0x144] sm:$0xf]
  %v111 = vld [vmem:[%s1 + $0x148] sm:$0xf]
  %v112 = vld [vmem:[%s1 + $0x14c] sm:$0xf]
  %v113 = vld [vmem:[%s1 + $0x150] sm:$0xf]
  %v114 = vld [vmem:[%s1 + $0x154] sm:$0xf]
  %v115 = vld [vmem:[%s1 + $0x158] sm:$0xf]
  %v116 = vld [vmem:[%s1 + $0x15c] sm:$0xf]
  %v117 = vld [vmem:[%s1 + $0x160] sm:$0xf]
  %v118 = vld [vmem:[%s1 + $0x164] sm:$0xf]
  %v119 = vld [vmem:[%s1 + $0x168] sm:$0xf]
  %v120 = vld [vmem:[%s1 + $0x16c] sm:$0xf]
  %v121 = vld [vmem:[%s1 + $0x170] sm:$0xf]
  %v122 = vld [vmem:[%s1 + $0x174] sm:$0xf]
  %v123 = vld [vmem:[%s1 + $0x178] sm:$0xf]
  %v124 = vld [vmem:[%s1 + $0x17c] sm:$0xf]
  %v125 = vld [vmem:[%s1 + $0x180] sm:$0xf]
  %v126 = vld [vmem:[%s1 + $0x184] sm:$0xf]
  %v127 = vld [vmem:[%s1 + $0x188] sm:$0xf]
  %v128 = vld [vmem:[%s1 + $0x18c] sm:$0xf]
  %v129 = vld [vmem:[%s1 + $0x190] sm:$0xf]
  %v130 = vld [vmem:[%s1 + $0x194] sm:$0xf]
  %v131 = vld [vmem:[%s1 + $0x198] sm:$0xf]
  %v132 = vld [vmem:[%s1 + $0x19c] sm:$0xf]
  %v133 = vld [vmem:[%s1 + $0x1a0] sm:$0xf]
  %v134 = vld [vmem:[%s1 + $0x1a4] sm:$0xf]
  %v135 = vld [vmem:[%s1 + $0x1a8] sm:$0xf]
  %v136 = vld [vmem:[%s1 + $0x1ac] sm:$0xf]
  %v137 = vld [vmem:[%s1 + $0x1b0] sm:$0xf]
  %v138 = vld [vmem:[%s1 + $0x1b4] sm:$0xf]
  %v139 = vld [vmem:[%s1 + $0x1b8] sm:$0xf]
  %v140 = vld [vmem:[%s1 + $0x1bc] sm:$0xf]
  %v141 = vld [vmem:[%s1 + $0x1c0] sm:$0xf]
  %v142 = vld [vmem:[%s1 + $0x1c4] sm:$0xf]
  %v143 = vld [vmem:[%s1 + $0x1c8] sm:$0xf]
  %v144 = vld [vmem:[%s1 + $0x1cc] sm:$0xf]
  %v145 = vld [vmem:[%s1 + $0x1d0] sm:$0xf]
  %v146 = vld [vmem:[%s1 + $0x1d4] sm:$0xf]
  %v147 = vld [vmem:[%s1 + $0x1d8] sm:$0xf]
  %v148 = vld [vmem:[%s1 + $0x1dc] sm:$0xf]
  %v149 = vld [vmem:[%s1 + $0x1e0] sm:$0xf]
  %v150 = vld [vmem:[%s1 + $0x1e4] sm:$0xf]
  %v151 = vld [vmem:[%s1 + $0x1e8] sm:$0xf]
  %v152 = vld [vmem:[%s1 + $0x1ec] sm:$0xf]
  %v153 = vld [vmem:[%s1 + $0x1f0] sm:$0xf]
  %v154 = vld [vmem:[%s1 + $0x1f4] sm:$0xf]
  %v155 = vld [vmem:[%s1 + $0x1f8] sm:$0xf]
  %v156 = vld [vmem:[%s1 + $0x1fc] sm:$0xf]
  %v161 = vunpack.c.l.b16 %v25
  %v162 = vunpack.c.h.b16 %v25
  %v163 = vunpack.c.l.b16 %v26
  %v164 = vunpack.c.h.b16 %v26
  %v165 = vunpack.c.l.b16 %v27
  %v166 = vunpack.c.h.b16 %v27
  %v167 = vunpack.c.l.b16 %v28
  %v168 = vunpack.c.h.b16 %v28
  %v169 = vpack.c.b16 %v161, %v161
  %v170 = vpack.c.b16 %v162, %v162
  %v171 = vpack.c.b16 %v163, %v163
  %v172 = vpack.c.b16 %v164, %v164
  %v173 = vpack.c.b16 %v165, %v165
  %v174 = vpack.c.b16 %v166, %v166
  %v175 = vpack.c.b16 %v167, %v167
  %v176 = vpack.c.b16 %v168, %v168
  %v313 = vunpack.c.l.b16 %v29
  %v314 = vunpack.c.l.b16 %v30
  %v315 = vunpack.c.l.b16 %v31
  %v316 = vunpack.c.l.b16 %v32
  %v317 = vunpack.c.l.b16 %v33
  %v318 = vunpack.c.l.b16 %v34
  %v319 = vunpack.c.l.b16 %v35
  %v320 = vunpack.c.l.b16 %v36
  %v321 = vunpack.c.l.b16 %v37
  %v322 = vunpack.c.l.b16 %v38
  %v323 = vunpack.c.l.b16 %v39
  %v324 = vunpack.c.l.b16 %v40
  %v325 = vunpack.c.l.b16 %v41
  %v326 = vunpack.c.l.b16 %v42
  %v327 = vunpack.c.l.b16 %v43
  %v328 = vunpack.c.l.b16 %v44
  %v329 = vunpack.c.l.b16 %v45
  %v330 = vunpack.c.l.b16 %v46
  %v331 = vunpack.c.l.b16 %v47
  %v332 = vunpack.c.l.b16 %v48
  %v333 = vunpack.c.l.b16 %v49
  %v334 = vunpack.c.l.b16 %v50
  %v335 = vunpack.c.l.b16 %v51
  %v336 = vunpack.c.l.b16 %v52
  %v337 = vunpack.c.l.b16 %v53
  %v338 = vunpack.c.l.b16 %v54
  %v339 = vunpack.c.l.b16 %v55
  %v340 = vunpack.c.l.b16 %v56
  %v341 = vunpack.c.l.b16 %v57
  %v342 = vunpack.c.l.b16 %v58
  %v343 = vunpack.c.l.b16 %v59
  %v344 = vunpack.c.l.b16 %v60
  %v345 = vunpack.c.l.b16 %v61
  %v346 = vunpack.c.l.b16 %v62
  %v347 = vunpack.c.l.b16 %v63
  %v348 = vunpack.c.l.b16 %v64
  %v349 = vunpack.c.l.b16 %v65
  %v350 = vunpack.c.l.b16 %v66
  %v351 = vunpack.c.l.b16 %v67
  %v352 = vunpack.c.l.b16 %v68
  %v353 = vunpack.c.l.b16 %v69
  %v354 = vunpack.c.l.b16 %v70
  %v355 = vunpack.c.l.b16 %v71
  %v356 = vunpack.c.l.b16 %v72
  %v357 = vunpack.c.l.b16 %v73
  %v358 = vunpack.c.l.b16 %v74
  %v359 = vunpack.c.l.b16 %v75
  %v360 = vunpack.c.l.b16 %v76
  %v361 = vunpack.c.l.b16 %v77
  %v362 = vunpack.c.l.b16 %v78
  %v363 = vunpack.c.l.b16 %v79
  %v364 = vunpack.c.l.b16 %v80
  %v365 = vunpack.c.l.b16 %v81
  %v366 = vunpack.c.l.b16 %v82
  %v367 = vunpack.c.l.b16 %v83
  %v368 = vunpack.c.l.b16 %v84
  %v369 = vunpack.c.l.b16 %v85
  %v370 = vunpack.c.l.b16 %v86
  %v371 = vunpack.c.l.b16 %v87
  %v372 = vunpack.c.l.b16 %v88
  %v373 = vunpack.c.l.b16 %v89
  %v374 = vunpack.c.l.b16 %v90
  %v375 = vunpack.c.l.b16 %v91
  %v376 = vunpack.c.l.b16 %v92
  %v377 = vunpack.c.l.b16 %v93
  %v378 = vunpack.c.l.b16 %v94
  %v379 = vunpack.c.l.b16 %v95
  %v380 = vunpack.c.l.b16 %v96
  %v381 = vunpack.c.l.b16 %v97
  %v382 = vunpack.c.l.b16 %v98
  %v383 = vunpack.c.l.b16 %v99
  %v384 = vunpack.c.l.b16 %v100
  %v385 = vunpack.c.l.b16 %v101
  %v386 = vunpack.c.l.b16 %v102
  %v387 = vunpack.c.l.b16 %v103
  %v388 = vunpack.c.l.b16 %v104
  %v389 = vunpack.c.l.b16 %v105
  %v390 = vunpack.c.l.b16 %v106
  %v391 = vunpack.c.l.b16 %v107
  %v392 = vunpack.c.l.b16 %v108
  %v393 = vunpack.c.l.b16 %v109
  %v394 = vunpack.c.l.b16 %v110
  %v395 = vunpack.c.l.b16 %v111
  %v396 = vunpack.c.l.b16 %v112
  %v397 = vunpack.c.l.b16 %v113
  %v398 = vunpack.c.l.b16 %v114
  %v399 = vunpack.c.l.b16 %v115
  %v400 = vunpack.c.l.b16 %v116
  %v401 = vunpack.c.l.b16 %v117
  %v402 = vunpack.c.l.b16 %v118
  %v403 = vunpack.c.l.b16 %v119
  %v404 = vunpack.c.l.b16 %v120
  %v405 = vunpack.c.l.b16 %v121
  %v406 = vunpack.c.l.b16 %v122
  %v407 = vunpack.c.l.b16 %v123
  %v408 = vunpack.c.l.b16 %v124
  %v409 = vunpack.c.l.b16 %v125
  %v410 = vunpack.c.l.b16 %v126
  %v411 = vunpack.c.l.b16 %v127
  %v412 = vunpack.c.l.b16 %v128
  %v413 = vunpack.c.l.b16 %v129
  %v414 = vunpack.c.l.b16 %v130
  %v415 = vunpack.c.l.b16 %v131
  %v416 = vunpack.c.l.b16 %v132
  %v417 = vunpack.c.l.b16 %v133
  %v418 = vunpack.c.l.b16 %v134
  %v419 = vunpack.c.l.b16 %v135
  %v420 = vunpack.c.l.b16 %v136
  %v421 = vunpack.c.l.b16 %v137
  %v422 = vunpack.c.l.b16 %v138
  %v423 = vunpack.c.l.b16 %v139
  %v424 = vunpack.c.l.b16 %v140
  %v425 = vunpack.c.l.b16 %v141
  %v426 = vunpack.c.l.b16 %v142
  %v427 = vunpack.c.l.b16 %v143
  %v428 = vunpack.c.l.b16 %v144
  %v429 = vunpack.c.l.b16 %v145
  %v430 = vunpack.c.l.b16 %v146
  %v431 = vunpack.c.l.b16 %v147
  %v432 = vunpack.c.l.b16 %v148
  %v433 = vunpack.c.l.b16 %v149
  %v434 = vunpack.c.l.b16 %v150
  %v435 = vunpack.c.l.b16 %v151
  %v436 = vunpack.c.l.b16 %v152
  %v437 = vunpack.c.l.b16 %v153
  %v438 = vunpack.c.l.b16 %v154
  %v439 = vunpack.c.l.b16 %v155
  %v440 = vunpack.c.l.b16 %v156
  %v441 = vpack.c.b16 %v314, %v313
  %v442 = vpack.c.b16 %v316, %v315
  %v443 = vpack.c.b16 %v318, %v317
  %v444 = vpack.c.b16 %v320, %v319
  %v445 = vpack.c.b16 %v322, %v321
  %v446 = vpack.c.b16 %v324, %v323
  %v447 = vpack.c.b16 %v326, %v325
  %v448 = vpack.c.b16 %v328, %v327
  %v449 = vpack.c.b16 %v330, %v329
  %v450 = vpack.c.b16 %v332, %v331
  %v451 = vpack.c.b16 %v334, %v333
  %v452 = vpack.c.b16 %v336, %v335
  %v453 = vpack.c.b16 %v338, %v337
  %v454 = vpack.c.b16 %v340, %v339
  %v455 = vpack.c.b16 %v342, %v341
  %v456 = vpack.c.b16 %v344, %v343
  %v457 = vpack.c.b16 %v346, %v345
  %v458 = vpack.c.b16 %v348, %v347
  %v459 = vpack.c.b16 %v350, %v349
  %v460 = vpack.c.b16 %v352, %v351
  %v461 = vpack.c.b16 %v354, %v353
  %v462 = vpack.c.b16 %v356, %v355
  %v463 = vpack.c.b16 %v358, %v357
  %v464 = vpack.c.b16 %v360, %v359
  %v465 = vpack.c.b16 %v362, %v361
  %v466 = vpack.c.b16 %v364, %v363
  %v467 = vpack.c.b16 %v366, %v365
  %v468 = vpack.c.b16 %v368, %v367
  %v469 = vpack.c.b16 %v370, %v369
  %v470 = vpack.c.b16 %v372, %v371
  %v471 = vpack.c.b16 %v374, %v373
  %v472 = vpack.c.b16 %v376, %v375
  %v473 = vpack.c.b16 %v378, %v377
  %v474 = vpack.c.b16 %v380, %v379
  %v475 = vpack.c.b16 %v382, %v381
  %v476 = vpack.c.b16 %v384, %v383
  %v477 = vpack.c.b16 %v386, %v385
  %v478 = vpack.c.b16 %v388, %v387
  %v479 = vpack.c.b16 %v390, %v389
  %v480 = vpack.c.b16 %v392, %v391
  %v481 = vpack.c.b16 %v394, %v393
  %v482 = vpack.c.b16 %v396, %v395
  %v483 = vpack.c.b16 %v398, %v397
  %v484 = vpack.c.b16 %v400, %v399
  %v485 = vpack.c.b16 %v402, %v401
  %v486 = vpack.c.b16 %v404, %v403
  %v487 = vpack.c.b16 %v406, %v405
  %v488 = vpack.c.b16 %v408, %v407
  %v489 = vpack.c.b16 %v410, %v409
  %v490 = vpack.c.b16 %v412, %v411
  %v491 = vpack.c.b16 %v414, %v413
  %v492 = vpack.c.b16 %v416, %v415
  %v493 = vpack.c.b16 %v418, %v417
  %v494 = vpack.c.b16 %v420, %v419
  %v495 = vpack.c.b16 %v422, %v421
  %v496 = vpack.c.b16 %v424, %v423
  %v497 = vpack.c.b16 %v426, %v425
  %v498 = vpack.c.b16 %v428, %v427
  %v499 = vpack.c.b16 %v430, %v429
  %v500 = vpack.c.b16 %v432, %v431
  %v501 = vpack.c.b16 %v434, %v433
  %v502 = vpack.c.b16 %v436, %v435
  %v503 = vpack.c.b16 %v438, %v437
  %v504 = vpack.c.b16 %v440, %v439
  %569 = vmatprep.subr.bf16.mxu0 0
  %570 = vmatpush1.bf16.msra.mxu0 %v441
  %571 = vmatprep.subr.bf16.mxu0 0
  %572 = vmatpush1.bf16.msra.mxu0 %v442
  %573 = vmatprep.subr.bf16.mxu0 0
  %574 = vmatpush1.bf16.msra.mxu0 %v443
  %575 = vmatprep.subr.bf16.mxu0 0
  %576 = vmatpush1.bf16.msra.mxu0 %v444
  %577 = vmatprep.subr.bf16.mxu0 0
  %578 = vmatpush1.bf16.msra.mxu0 %v445
  %579 = vmatprep.subr.bf16.mxu0 0
  %580 = vmatpush1.bf16.msra.mxu0 %v446
  %581 = vmatprep.subr.bf16.mxu0 0
  %582 = vmatpush1.bf16.msra.mxu0 %v447
  %583 = vmatprep.subr.bf16.mxu0 0
  %584 = vmatpush1.bf16.msra.mxu0 %v448
  %585 = vmatprep.subr.bf16.mxu0 0
  %586 = vmatpush1.bf16.msra.mxu0 %v449
  %587 = vmatprep.subr.bf16.mxu0 0
  %588 = vmatpush1.bf16.msra.mxu0 %v450
  %589 = vmatprep.subr.bf16.mxu0 0
  %590 = vmatpush1.bf16.msra.mxu0 %v451
  %591 = vmatprep.subr.bf16.mxu0 0
  %592 = vmatpush1.bf16.msra.mxu0 %v452
  %593 = vmatprep.subr.bf16.mxu0 0
  %594 = vmatpush1.bf16.msra.mxu0 %v453
  %595 = vmatprep.subr.bf16.mxu0 0
  %596 = vmatpush1.bf16.msra.mxu0 %v454
  %597 = vmatprep.subr.bf16.mxu0 0
  %598 = vmatpush1.bf16.msra.mxu0 %v455
  %599 = vmatprep.subr.bf16.mxu0 0
  %600 = vmatpush1.bf16.msra.mxu0 %v456
  %601 = vmatprep.mubr.bf16.mxu0 %v170
  %602 = vmatmul.mubr.bf16.gmra.mrb[0].mxu0 %v169
  %v603 = vpop.f32.mrb[0].mxu0
  %v604 = vadd.f32 0.0, %v603
  %v605 = vpop.f32.mrb[0].mxu0
  %v606 = vpop.f32.mrb[0].mxu0
  %v607 = vpop.f32.mrb[0].mxu0
  %608 = vdwg.mxu0
  %609 = vmatprep.subr.bf16.mxu0 0
  %610 = vmatpush1.bf16.msra.mxu0 %v457
  %611 = vmatprep.subr.bf16.mxu0 0
  %612 = vmatpush1.bf16.msra.mxu0 %v458
  %613 = vmatprep.subr.bf16.mxu0 0
  %614 = vmatpush1.bf16.msra.mxu0 %v459
  %615 = vmatprep.subr.bf16.mxu0 0
  %616 = vmatpush1.bf16.msra.mxu0 %v460
  %617 = vmatprep.subr.bf16.mxu0 0
  %618 = vmatpush1.bf16.msra.mxu0 %v461
  %619 = vmatprep.subr.bf16.mxu0 0
  %620 = vmatpush1.bf16.msra.mxu0 %v462
  %621 = vmatprep.subr.bf16.mxu0 0
  %622 = vmatpush1.bf16.msra.mxu0 %v463
  %623 = vmatprep.subr.bf16.mxu0 0
  %624 = vmatpush1.bf16.msra.mxu0 %v464
  %625 = vmatprep.subr.bf16.mxu0 0
  %626 = vmatpush1.bf16.msra.mxu0 %v465
  %627 = vmatprep.subr.bf16.mxu0 0
  %628 = vmatpush1.bf16.msra.mxu0 %v466
  %629 = vmatprep.subr.bf16.mxu0 0
  %630 = vmatpush1.bf16.msra.mxu0 %v467
  %631 = vmatprep.subr.bf16.mxu0 0
  %632 = vmatpush1.bf16.msra.mxu0 %v468
  %633 = vmatprep.subr.bf16.mxu0 0
  %634 = vmatpush1.bf16.msra.mxu0 %v469
  %635 = vmatprep.subr.bf16.mxu0 0
  %636 = vmatpush1.bf16.msra.mxu0 %v470
  %637 = vmatprep.subr.bf16.mxu0 0
  %638 = vmatpush1.bf16.msra.mxu0 %v471
  %639 = vmatprep.subr.bf16.mxu0 0
  %640 = vmatpush1.bf16.msra.mxu0 %v472
  %641 = vmatprep.mubr.bf16.mxu0 %v172
  %642 = vmatmul.mubr.bf16.gmra.mrb[0].mxu0 %v171
  %v643 = vpop.f32.mrb[0].mxu0
  %v644 = vadd.f32 %v604, %v643
  %v645 = vpop.f32.mrb[0].mxu0
  %v646 = vpop.f32.mrb[0].mxu0
  %v647 = vpop.f32.mrb[0].mxu0
  %648 = vdwg.mxu0
  %649 = vmatprep.subr.bf16.mxu0 0
  %650 = vmatpush1.bf16.msra.mxu0 %v473
  %651 = vmatprep.subr.bf16.mxu0 0
  %652 = vmatpush1.bf16.msra.mxu0 %v474
  %653 = vmatprep.subr.bf16.mxu0 0
  %654 = vmatpush1.bf16.msra.mxu0 %v475
  %655 = vmatprep.subr.bf16.mxu0 0
  %656 = vmatpush1.bf16.msra.mxu0 %v476
  %657 = vmatprep.subr.bf16.mxu0 0
  %658 = vmatpush1.bf16.msra.mxu0 %v477
  %659 = vmatprep.subr.bf16.mxu0 0
  %660 = vmatpush1.bf16.msra.mxu0 %v478
  %661 = vmatprep.subr.bf16.mxu0 0
  %662 = vmatpush1.bf16.msra.mxu0 %v479
  %663 = vmatprep.subr.bf16.mxu0 0
  %664 = vmatpush1.bf16.msra.mxu0 %v480
  %665 = vmatprep.subr.bf16.mxu0 0
  %666 = vmatpush1.bf16.msra.mxu0 %v481
  %667 = vmatprep.subr.bf16.mxu0 0
  %668 = vmatpush1.bf16.msra.mxu0 %v482
  %669 = vmatprep.subr.bf16.mxu0 0
  %670 = vmatpush1.bf16.msra.mxu0 %v483
  %671 = vmatprep.subr.bf16.mxu0 0
  %672 = vmatpush1.bf16.msra.mxu0 %v484
  %673 = vmatprep.subr.bf16.mxu0 0
  %674 = vmatpush1.bf16.msra.mxu0 %v485
  %675 = vmatprep.subr.bf16.mxu0 0
  %676 = vmatpush1.bf16.msra.mxu0 %v486
  %677 = vmatprep.subr.bf16.mxu0 0
  %678 = vmatpush1.bf16.msra.mxu0 %v487
  %679 = vmatprep.subr.bf16.mxu0 0
  %680 = vmatpush1.bf16.msra.mxu0 %v488
  %681 = vmatprep.mubr.bf16.mxu0 %v174
  %682 = vmatmul.mubr.bf16.gmra.mrb[0].mxu0 %v173
  %v683 = vpop.f32.mrb[0].mxu0
  %v684 = vadd.f32 %v644, %v683
  %v685 = vpop.f32.mrb[0].mxu0
  %v686 = vpop.f32.mrb[0].mxu0
  %v687 = vpop.f32.mrb[0].mxu0
  %688 = vdwg.mxu0
  %689 = vmatprep.subr.bf16.mxu0 0
  %690 = vmatpush1.bf16.msra.mxu0 %v489
  %691 = vmatprep.subr.bf16.mxu0 0
  %692 = vmatpush1.bf16.msra.mxu0 %v490
  %693 = vmatprep.subr.bf16.mxu0 0
  %694 = vmatpush1.bf16.msra.mxu0 %v491
  %695 = vmatprep.subr.bf16.mxu0 0
  %696 = vmatpush1.bf16.msra.mxu0 %v492
  %697 = vmatprep.subr.bf16.mxu0 0
  %698 = vmatpush1.bf16.msra.mxu0 %v493
  %699 = vmatprep.subr.bf16.mxu0 0
  %700 = vmatpush1.bf16.msra.mxu0 %v494
  %701 = vmatprep.subr.bf16.mxu0 0
  %702 = vmatpush1.bf16.msra.mxu0 %v495
  %703 = vmatprep.subr.bf16.mxu0 0
  %704 = vmatpush1.bf16.msra.mxu0 %v496
  %705 = vmatprep.subr.bf16.mxu0 0
  %706 = vmatpush1.bf16.msra.mxu0 %v497
  %707 = vmatprep.subr.bf16.mxu0 0
  %708 = vmatpush1.bf16.msra.mxu0 %v498
  %709 = vmatprep.subr.bf16.mxu0 0
  %710 = vmatpush1.bf16.msra.mxu0 %v499
  %711 = vmatprep.subr.bf16.mxu0 0
  %712 = vmatpush1.bf16.msra.mxu0 %v500
  %713 = vmatprep.subr.bf16.mxu0 0
  %714 = vmatpush1.bf16.msra.mxu0 %v501
  %715 = vmatprep.subr.bf16.mxu0 0
  %716 = vmatpush1.bf16.msra.mxu0 %v502
  %717 = vmatprep.subr.bf16.mxu0 0
  %718 = vmatpush1.bf16.msra.mxu0 %v503
  %719 = vmatprep.subr.bf16.mxu0 0
  %720 = vmatpush1.bf16.msra.mxu0 %v504
  %721 = vmatprep.mubr.bf16.mxu0 %v176
  %722 = vmatmul.mubr.bf16.gmra.mrb[0].mxu0 %v175
  %v723 = vpop.f32.mrb[0].mxu0
  %v724 = vadd.f32 %v684, %v723
  %v725 = vpop.f32.mrb[0].mxu0
  %v726 = vpop.f32.mrb[0].mxu0
  %v727 = vpop.f32.mrb[0].mxu0
  %728 = vdwg.mxu0
  %v729 = vld [vmem:[%s2] sm:$0xf]
  %vm730 = vcmask 257024
  %v731 = vsel %vm730, %v729, 0.0
  %v732 = vrot.slane %v731, 4
  %v733 = vadd.f32 %v731, %v732
  %v734 = vrot.slane %v733, 2
  %v735 = vadd.f32 %v733, %v734
  %v736 = vrot.slane %v735, 1
  %v737 = vadd.f32 %v735, %v736
  %v738 = vld [vmem:[%s3] sm:$0xff]
  %v739 = vld [vmem:[%s3 + $0x8] sm:$0xff]
  %v740 = vld [vmem:[%s3 + $0x10] sm:$0xff]
  %v741 = vld [vmem:[%s3 + $0x18] sm:$0xff]
  %v742 = vld [vmem:[%s3 + $0x20] sm:$0xff]
  %v743 = vld [vmem:[%s3 + $0x28] sm:$0xff]
  %v744 = vld [vmem:[%s3 + $0x30] sm:$0xff]
  %v745 = vld [vmem:[%s3 + $0x38] sm:$0xff]
  %v746 = vld [vmem:[%s3 + $0x40] sm:$0xff]
  %v747 = vld [vmem:[%s3 + $0x48] sm:$0xff]
  %v748 = vld [vmem:[%s3 + $0x50] sm:$0xff]
  %v749 = vld [vmem:[%s3 + $0x58] sm:$0xff]
  %v750 = vld [vmem:[%s3 + $0x60] sm:$0xff]
  %v751 = vld [vmem:[%s3 + $0x68] sm:$0xff]
  %v752 = vld [vmem:[%s3 + $0x70] sm:$0xff]
  %v753 = vld [vmem:[%s3 + $0x78] sm:$0xff]
  %v754 = vadd.f32 %v738, %v737
  %v755 = vadd.f32 %v739, %v737
  %v756 = vadd.f32 %v740, %v737
  %v757 = vadd.f32 %v741, %v737
  %v758 = vadd.f32 %v742, %v737
  %v759 = vadd.f32 %v743, %v737
  %v760 = vadd.f32 %v744, %v737
  %v761 = vadd.f32 %v745, %v737
  %v762 = vadd.f32 %v746, %v737
  %v763 = vadd.f32 %v747, %v737
  %v764 = vadd.f32 %v748, %v737
  %v765 = vadd.f32 %v749, %v737
  %v766 = vadd.f32 %v750, %v737
  %v767 = vadd.f32 %v751, %v737
  %v768 = vadd.f32 %v752, %v737
  %v769 = vadd.f32 %v753, %v737
  %v770 = vmul.f32 %v754, 0.0625
  %v771 = vmul.f32 %v755, 0.0625
  %v772 = vmul.f32 %v756, 0.0625
  %v773 = vmul.f32 %v757, 0.0625
  %v774 = vmul.f32 %v758, 0.0625
  %v775 = vmul.f32 %v759, 0.0625
  %v776 = vmul.f32 %v760, 0.0625
  %v777 = vmul.f32 %v761, 0.0625
  %v778 = vmul.f32 %v762, 0.0625
  %v779 = vmul.f32 %v763, 0.0625
  %v780 = vmul.f32 %v764, 0.0625
  %v781 = vmul.f32 %v765, 0.0625
  %v782 = vmul.f32 %v766, 0.0625
  %v783 = vmul.f32 %v767, 0.0625
  %v784 = vmul.f32 %v768, 0.0625
  %v785 = vmul.f32 %v769, 0.0625
  %v786 = vpack.c.bf16 %v771, %v770
  %v787 = vpack.c.bf16 %v773, %v772
  %v788 = vpack.c.bf16 %v775, %v774
  %v789 = vpack.c.bf16 %v777, %v776
  %v790 = vpack.c.bf16 %v779, %v778
  %v791 = vpack.c.bf16 %v781, %v780
  %v792 = vpack.c.bf16 %v783, %v782
  %v793 = vpack.c.bf16 %v785, %v784
  %v794 = vld [vmem:[%s4] sm:$0xf]
  %v795 = vld [vmem:[%s4 + $0x4] sm:$0xf]
  %v796 = vld [vmem:[%s4 + $0x8] sm:$0xf]
  %v797 = vld [vmem:[%s4 + $0xc] sm:$0xf]
  %v802 = vunpack.c.l.b16 %v794
  %v803 = vunpack.c.l.b16 %v795
  %v804 = vunpack.c.l.b16 %v796
  %v805 = vunpack.c.l.b16 %v797
  %v806 = vpack.c.b16 %v803, %v802
  %v807 = vpack.c.b16 %v805, %v804
  %vm810 = vcmask 261120
  %v812 = vsel %vm810, %v786, 0
  %v815 = vsel %vm810, %v787, 0
  %v818 = vsel %vm810, %v788, 0
  %v821 = vsel %vm810, %v789, 0
  %v824 = vsel %vm810, %v790, 0
  %v827 = vsel %vm810, %v791, 0
  %v830 = vsel %vm810, %v792, 0
  %v833 = vsel %vm810, %v793, 0
  %835 = vmatprep.subr.bf16.mxu0 0
  %836 = vmatpush1.bf16.msra.mxu0 %v806
  %837 = vmatprep.subr.bf16.mxu0 0
  %838 = vmatpush1.bf16.msra.mxu0 %v807
  %839 = vmatprep.subr.bf16.mxu0 0
  %840 = vmatpush1.bf16.msra.mxu0 0
  %841 = vmatprep.subr.bf16.mxu0 0
  %842 = vmatpush1.bf16.msra.mxu0 0
  %843 = vmatprep.subr.bf16.mxu0 0
  %844 = vmatpush1.bf16.msra.mxu0 0
  %845 = vmatprep.subr.bf16.mxu0 0
  %846 = vmatpush1.bf16.msra.mxu0 0
  %847 = vmatprep.subr.bf16.mxu0 0
  %848 = vmatpush1.bf16.msra.mxu0 0
  %849 = vmatprep.subr.bf16.mxu0 0
  %850 = vmatpush1.bf16.msra.mxu0 0
  %851 = vmatprep.subr.bf16.mxu0 0
  %852 = vmatpush1.bf16.msra.mxu0 0
  %853 = vmatprep.subr.bf16.mxu0 0
  %854 = vmatpush1.bf16.msra.mxu0 0
  %855 = vmatprep.subr.bf16.mxu0 0
  %856 = vmatpush1.bf16.msra.mxu0 0
  %857 = vmatprep.subr.bf16.mxu0 0
  %858 = vmatpush1.bf16.msra.mxu0 0
  %859 = vmatprep.subr.bf16.mxu0 0
  %860 = vmatpush1.bf16.msra.mxu0 0
  %861 = vmatprep.subr.bf16.mxu0 0
  %862 = vmatpush1.bf16.msra.mxu0 0
  %863 = vmatprep.subr.bf16.mxu0 0
  %864 = vmatpush1.bf16.msra.mxu0 0
  %865 = vmatprep.subr.bf16.mxu0 0
  %866 = vmatpush1.bf16.msra.mxu0 0
  %867 = vmatprep.mubr.bf16.mxu0 0
  %868 = vmatmul.mubr.bf16.gmra.mrb[0].mxu0 %v812
  %v869 = vpop.f32.mrb[0].mxu0
  %v870 = vadd.f32 0.0, %v869
  %v871 = vpop.f32.mrb[0].mxu0
  %v872 = vpop.f32.mrb[0].mxu0
  %v873 = vadd.f32 0.0, %v872
  %v874 = vpop.f32.mrb[0].mxu0
  %875 = vmatprep.mubr.bf16.mxu0 0
  %876 = vmatmul.mubr.bf16.gmra.mrb[0].mxu0 %v815
  %v877 = vpop.f32.mrb[0].mxu0
  %v878 = vadd.f32 0.0, %v877
  %v879 = vpop.f32.mrb[0].mxu0
  %v880 = vpop.f32.mrb[0].mxu0
  %v881 = vadd.f32 0.0, %v880
  %v882 = vpop.f32.mrb[0].mxu0
  %883 = vmatprep.mubr.bf16.mxu0 0
  %884 = vmatmul.mubr.bf16.gmra.mrb[0].mxu0 %v818
  %v885 = vpop.f32.mrb[0].mxu0
  %v886 = vadd.f32 0.0, %v885
  %v887 = vpop.f32.mrb[0].mxu0
  %v888 = vpop.f32.mrb[0].mxu0
  %v889 = vadd.f32 0.0, %v888
  %v890 = vpop.f32.mrb[0].mxu0
  %891 = vmatprep.mubr.bf16.mxu0 0
  %892 = vmatmul.mubr.bf16.gmra.mrb[0].mxu0 %v821
  %v893 = vpop.f32.mrb[0].mxu0
  %v894 = vadd.f32 0.0, %v893
  %v895 = vpop.f32.mrb[0].mxu0
  %v896 = vpop.f32.mrb[0].mxu0
  %v897 = vadd.f32 0.0, %v896
  %v898 = vpop.f32.mrb[0].mxu0
  %899 = vmatprep.mubr.bf16.mxu0 0
  %900 = vmatmul.mubr.bf16.gmra.mrb[0].mxu0 %v824
  %v901 = vpop.f32.mrb[0].mxu0
  %v902 = vadd.f32 0.0, %v901
  %v903 = vpop.f32.mrb[0].mxu0
  %v904 = vpop.f32.mrb[0].mxu0
  %v905 = vadd.f32 0.0, %v904
  %v906 = vpop.f32.mrb[0].mxu0
  %907 = vmatprep.mubr.bf16.mxu0 0
  %908 = vmatmul.mubr.bf16.gmra.mrb[0].mxu0 %v827
  %v909 = vpop.f32.mrb[0].mxu0
  %v910 = vadd.f32 0.0, %v909
  %v911 = vpop.f32.mrb[0].mxu0
  %v912 = vpop.f32.mrb[0].mxu0
  %v913 = vadd.f32 0.0, %v912
  %v914 = vpop.f32.mrb[0].mxu0
  %915 = vmatprep.mubr.bf16.mxu0 0
  %916 = vmatmul.mubr.bf16.gmra.mrb[0].mxu0 %v830
  %v917 = vpop.f32.mrb[0].mxu0
  %v918 = vadd.f32 0.0, %v917
  %v919 = vpop.f32.mrb[0].mxu0
  %v920 = vpop.f32.mrb[0].mxu0
  %v921 = vadd.f32 0.0, %v920
  %v922 = vpop.f32.mrb[0].mxu0
  %923 = vmatprep.mubr.bf16.mxu0 0
  %924 = vmatmul.mubr.bf16.gmra.mrb[0].mxu0 %v833
  %v925 = vpop.f32.mrb[0].mxu0
  %v926 = vadd.f32 0.0, %v925
  %v927 = vpop.f32.mrb[0].mxu0
  %v928 = vpop.f32.mrb[0].mxu0
  %v929 = vadd.f32 0.0, %v928
  %v930 = vpop.f32.mrb[0].mxu0
  %931 = vdwg.mxu0
  %v932 = vmul.f32 %v724, %v724
  %v933 = vsel %vm810, %v932, 0.0
  %934 = vadd.xlane.f32.xlu0 %v933
  %v935 = vpop.xlane.xlu0 %934
  %v936 = vmax.f32 %v935, 1e-12
  %v937 = vrsqrt.pop %v936
  %v938 = vmul.f32 %v724, %v937
  %v939 = vmul.f32 %v870, %v870
  %v940 = vmul.f32 %v873, %v873
  %v941 = vmul.f32 %v878, %v878
  %v942 = vmul.f32 %v881, %v881
  %v943 = vmul.f32 %v886, %v886
  %v944 = vmul.f32 %v889, %v889
  %v945 = vmul.f32 %v894, %v894
  %v946 = vmul.f32 %v897, %v897
  %v947 = vmul.f32 %v902, %v902
  %v948 = vmul.f32 %v905, %v905
  %v949 = vmul.f32 %v910, %v910
  %v950 = vmul.f32 %v913, %v913
  %v951 = vmul.f32 %v918, %v918
  %v952 = vmul.f32 %v921, %v921
  %v953 = vmul.f32 %v926, %v926
  %v954 = vmul.f32 %v929, %v929
  %v955 = vsel %vm810, %v939, 0.0
  %956 = vadd.xlane.f32.xlu0 %v955
  %v957 = vpop.xlane.xlu0 %956
  %v958 = vsel %vm810, %v940, 0.0
  %959 = vadd.xlane.f32.xlu0 %v958
  %v960 = vpop.xlane.xlu0 %959
  %v961 = vsel %vm810, %v941, 0.0
  %962 = vadd.xlane.f32.xlu0 %v961
  %v963 = vpop.xlane.xlu0 %962
  %v964 = vsel %vm810, %v942, 0.0
  %965 = vadd.xlane.f32.xlu0 %v964
  %v966 = vpop.xlane.xlu0 %965
  %v967 = vsel %vm810, %v943, 0.0
  %968 = vadd.xlane.f32.xlu0 %v967
  %v969 = vpop.xlane.xlu0 %968
  %v970 = vsel %vm810, %v944, 0.0
  %971 = vadd.xlane.f32.xlu0 %v970
  %v972 = vpop.xlane.xlu0 %971
  %v973 = vsel %vm810, %v945, 0.0
  %974 = vadd.xlane.f32.xlu0 %v973
  %v975 = vpop.xlane.xlu0 %974
  %v976 = vsel %vm810, %v946, 0.0
  %977 = vadd.xlane.f32.xlu0 %v976
  %v978 = vpop.xlane.xlu0 %977
  %v979 = vsel %vm810, %v947, 0.0
  %980 = vadd.xlane.f32.xlu0 %v979
  %v981 = vpop.xlane.xlu0 %980
  %v982 = vsel %vm810, %v948, 0.0
  %983 = vadd.xlane.f32.xlu0 %v982
  %v984 = vpop.xlane.xlu0 %983
  %v985 = vsel %vm810, %v949, 0.0
  %986 = vadd.xlane.f32.xlu0 %v985
  %v987 = vpop.xlane.xlu0 %986
  %v988 = vsel %vm810, %v950, 0.0
  %989 = vadd.xlane.f32.xlu0 %v988
  %v990 = vpop.xlane.xlu0 %989
  %v991 = vsel %vm810, %v951, 0.0
  %992 = vadd.xlane.f32.xlu0 %v991
  %v993 = vpop.xlane.xlu0 %992
  %v994 = vsel %vm810, %v952, 0.0
  %995 = vadd.xlane.f32.xlu0 %v994
  %v996 = vpop.xlane.xlu0 %995
  %v997 = vsel %vm810, %v953, 0.0
  %998 = vadd.xlane.f32.xlu0 %v997
  %v999 = vpop.xlane.xlu0 %998
  %v1000 = vsel %vm810, %v954, 0.0
  %1001 = vadd.xlane.f32.xlu0 %v1000
  %v1002 = vpop.xlane.xlu0 %1001
  %v1003 = vmax.f32 %v957, 1e-12
  %v1004 = vmax.f32 %v960, 1e-12
  %v1005 = vmax.f32 %v963, 1e-12
  %v1006 = vmax.f32 %v966, 1e-12
  %v1007 = vmax.f32 %v969, 1e-12
  %v1008 = vmax.f32 %v972, 1e-12
  %v1009 = vmax.f32 %v975, 1e-12
  %v1010 = vmax.f32 %v978, 1e-12
  %v1011 = vmax.f32 %v981, 1e-12
  %v1012 = vmax.f32 %v984, 1e-12
  %v1013 = vmax.f32 %v987, 1e-12
  %v1014 = vmax.f32 %v990, 1e-12
  %v1015 = vmax.f32 %v993, 1e-12
  %v1016 = vmax.f32 %v996, 1e-12
  %v1017 = vmax.f32 %v999, 1e-12
  %v1018 = vmax.f32 %v1002, 1e-12
  %v1019 = vrsqrt.pop %v1003
  %v1020 = vrsqrt.pop %v1004
  %v1021 = vrsqrt.pop %v1005
  %v1022 = vrsqrt.pop %v1006
  %v1023 = vrsqrt.pop %v1007
  %v1024 = vrsqrt.pop %v1008
  %v1025 = vrsqrt.pop %v1009
  %v1026 = vrsqrt.pop %v1010
  %v1027 = vrsqrt.pop %v1011
  %v1028 = vrsqrt.pop %v1012
  %v1029 = vrsqrt.pop %v1013
  %v1030 = vrsqrt.pop %v1014
  %v1031 = vrsqrt.pop %v1015
  %v1032 = vrsqrt.pop %v1016
  %v1033 = vrsqrt.pop %v1017
  %v1034 = vrsqrt.pop %v1018
  %v1035 = vmul.f32 %v870, %v1019
  %v1036 = vmul.f32 %v873, %v1020
  %v1037 = vmul.f32 %v878, %v1021
  %v1038 = vmul.f32 %v881, %v1022
  %v1039 = vmul.f32 %v886, %v1023
  %v1040 = vmul.f32 %v889, %v1024
  %v1041 = vmul.f32 %v894, %v1025
  %v1042 = vmul.f32 %v897, %v1026
  %v1043 = vmul.f32 %v902, %v1027
  %v1044 = vmul.f32 %v905, %v1028
  %v1045 = vmul.f32 %v910, %v1029
  %v1046 = vmul.f32 %v913, %v1030
  %v1047 = vmul.f32 %v918, %v1031
  %v1048 = vmul.f32 %v921, %v1032
  %v1049 = vmul.f32 %v926, %v1033
  %v1050 = vmul.f32 %v929, %v1034
  %s1051 = sld [smem:[#allocation2]]
  %v1052 = vstv %s1051
  %v1053 = vmul.f32 %v1052, 1.442695
  %v1054 = vpow.pop %v1053
  %s1055 = vtos %v1054
  %v1057 = vsel %vm810, %v938, 0
  %v1060 = vsel %vm810, %v1035, 0
  %v1063 = vsel %vm810, %v1036, 0
  %v1066 = vsel %vm810, %v1037, 0
  %v1069 = vsel %vm810, %v1038, 0
  %v1072 = vsel %vm810, %v1039, 0
  %v1075 = vsel %vm810, %v1040, 0
  %v1078 = vsel %vm810, %v1041, 0
  %v1081 = vsel %vm810, %v1042, 0
  %v1084 = vsel %vm810, %v1043, 0
  %v1087 = vsel %vm810, %v1044, 0
  %v1090 = vsel %vm810, %v1045, 0
  %v1093 = vsel %vm810, %v1046, 0
  %v1096 = vsel %vm810, %v1047, 0
  %v1099 = vsel %vm810, %v1048, 0
  %v1102 = vsel %vm810, %v1049, 0
  %v1105 = vsel %vm810, %v1050, 0
  %1107 = vmatprep.subr.mxu0 0.0
  %1108 = vmatpush1.xpose.msra.mxu0 %v1060
  %1109 = vmatprep.subr.mxu0 0.0
  %1110 = vmatpush1.xpose.msra.mxu0 %v1063
  %1111 = vmatprep.subr.mxu0 0.0
  %1112 = vmatpush1.xpose.msra.mxu0 %v1066
  %1113 = vmatprep.subr.mxu0 0.0
  %1114 = vmatpush1.xpose.msra.mxu0 %v1069
  %1115 = vmatprep.subr.mxu0 0.0
  %1116 = vmatpush1.xpose.msra.mxu0 %v1072
  %1117 = vmatprep.subr.mxu0 0.0
  %1118 = vmatpush1.xpose.msra.mxu0 %v1075
  %1119 = vmatprep.subr.mxu0 0.0
  %1120 = vmatpush1.xpose.msra.mxu0 %v1078
  %1121 = vmatprep.subr.mxu0 0.0
  %1122 = vmatpush1.xpose.msra.mxu0 %v1081
  %1123 = vmatprep.subr.mxu0 0.0
  %1124 = vmatpush1.xpose.msra.mxu0 %v1084
  %1125 = vmatprep.subr.mxu0 0.0
  %1126 = vmatpush1.xpose.msra.mxu0 %v1087
  %1127 = vmatprep.subr.mxu0 0.0
  %1128 = vmatpush1.xpose.msra.mxu0 %v1090
  %1129 = vmatprep.subr.mxu0 0.0
  %1130 = vmatpush1.xpose.msra.mxu0 %v1093
  %1131 = vmatprep.subr.mxu0 0.0
  %1132 = vmatpush1.xpose.msra.mxu0 %v1096
  %1133 = vmatprep.subr.mxu0 0.0
  %1134 = vmatpush1.xpose.msra.mxu0 %v1099
  %1135 = vmatprep.subr.mxu0 0.0
  %1136 = vmatpush1.xpose.msra.mxu0 %v1102
  %1137 = vmatprep.subr.mxu0 0.0
  %1138 = vmatpush1.xpose.msra.mxu0 %v1105
  %1139 = vmatprep.subr.mxu0 0.0
  %1140 = vmatpush1.xpose.msra.mxu0 0.0
  %1141 = vmatprep.subr.mxu0 0.0
  %1142 = vmatpush1.xpose.msra.mxu0 0.0
  %1143 = vmatprep.subr.mxu0 0.0
  %1144 = vmatpush1.xpose.msra.mxu0 0.0
  %1145 = vmatprep.subr.mxu0 0.0
  %1146 = vmatpush1.xpose.msra.mxu0 0.0
  %1147 = vmatprep.subr.mxu0 0.0
  %1148 = vmatpush1.xpose.msra.mxu0 0.0
  %1149 = vmatprep.subr.mxu0 0.0
  %1150 = vmatpush1.xpose.msra.mxu0 0.0
  %1151 = vmatprep.subr.mxu0 0.0
  %1152 = vmatpush1.xpose.msra.mxu0 0.0
  %1153 = vmatprep.subr.mxu0 0.0
  %1154 = vmatpush1.xpose.msra.mxu0 0.0
  %1155 = vmatprep.subr.mxu0 0.0
  %1156 = vmatpush1.xpose.msra.mxu0 0.0
  %1157 = vmatprep.subr.mxu0 0.0
  %1158 = vmatpush1.xpose.msra.mxu0 0.0
  %1159 = vmatprep.subr.mxu0 0.0
  %1160 = vmatpush1.xpose.msra.mxu0 0.0
  %1161 = vmatprep.subr.mxu0 0.0
  %1162 = vmatpush1.xpose.msra.mxu0 0.0
  %1163 = vmatprep.subr.mxu0 0.0
  %1164 = vmatpush1.xpose.msra.mxu0 0.0
  %1165 = vmatprep.subr.mxu0 0.0
  %1166 = vmatpush1.xpose.msra.mxu0 0.0
  %1167 = vmatprep.subr.mxu0 0.0
  %1168 = vmatpush1.xpose.msra.mxu0 0.0
  %1169 = vmatprep.subr.mxu0 0.0
  %1170 = vmatpush1.xpose.msra.mxu0 0.0
  %1171 = vmatprep.mubr.f32.mxu0 0.0
  %1172 = vmatmul.mubr.f32.gmra.mrb[0].mxu0 %v1057
  %v1173 = vpop.f32.mrb[0].mxu0
  %v1174 = vadd.f32 0.0, %v1173
  %v1175 = vpop.f32.mrb[0].mxu0
  %1176 = vdwg.mxu0
  %v1177 = vstv %s1055
  %v1178 = vmul.f32 %v1177, %v1174
  %1179 = vst [vmem:[%s6] sm:$0xff] %v1178
  // Predicated region
  $region26: #{optimized_context_forward.1} parent=0 // pred_check
    _
  $region27: #{optimized_context_forward.1} parent=0 // pred_check_branch
    %1181 = sbr.rel (0) target = $region29
  $region28: #{optimized_context_forward.1} parent=0 // pred_region
    _
  $region29: #{optimized_context_forward.1} parent=0 // pred_fallthru
    _
  // Predicated region
  $region30: #{optimized_context_forward.1} parent=0 // pred_check
    _
  $region31: #{optimized_context_forward.1} parent=0 // pred_check_branch
    %1183 = sbr.rel (0) target = $region33
  $region32: #{optimized_context_forward.1} parent=0 // pred_region
    _
  $region33: #{optimized_context_forward.1} parent=0 // pred_fallthru
    _

</llo_original>
